<compile_context>
chip_gen: v7x
topology: tpu7x:2x2x1
jax: 0.10.0
libtpu: 0.0.40
codegen_flags: <defaults>
</compile_context>

<pallas_src>
import jax
import jax.numpy as jnp
from jax.experimental import pallas as pl
from jax.experimental.pallas import tpu as pltpu


def _mlp_kernel(x_ref, w1t_ref, b1_ref, w23t_ref, b23_ref, o_ref):
    # x_ref: (TILE_N, 10) row tile.  Weights/biases are full-array blocks with
    # constant index_maps, so they are resident across grid steps.
    x = x_ref[...]                                                   # (T, 10)
    # Linear1: (T,10) @ (10,20) -> (T,20), f32 accumulation.
    h = jnp.dot(x, w1t_ref[...], preferred_element_type=jnp.float32)
    h = jnp.maximum(h + b1_ref[...], 0.0)                            # ReLU
    # Folded linear2 + output_layer: (T,20) @ (20,2) -> (T,2), row-major.
    o = jnp.dot(h, w23t_ref[...], preferred_element_type=jnp.float32)
    o_ref[...] = (o + b23_ref[...]).astype(o_ref.dtype)


def my_tiny_gpt_forward(x_tokens, params, *, tile_n=8192):
    """x_tokens: (batch, seq, 10) float32 -> (batch, seq, 2) float32."""
    w1, b1, w2, b2, w3, b3 = params
    batch, seq, d_in = x_tokens.shape
    n = batch * seq

    # Fold the last two linears (exact composition, no nonlinearity between):
    #   out = W3 @ (W2 @ h + b2) + b3 = (W3 @ W2) @ h + (W3 @ b2 + b3)
    w1t = w1.T                              # (10, 20)
    w23t = (w3 @ w2).T                      # (20, 2)
    b1_row = b1.reshape(1, -1)              # (1, 20) broadcasts over rows
    b23_row = (w3 @ b2 + b3).reshape(1, -1)  # (1, 2)

    # Row tile: sublane dim must be a multiple of 8 or equal the full array
    # dim.  No padding of x — the last block may be partial.
    tile_n = max(8, (int(tile_n) // 8) * 8)
    tile = n if n <= tile_n else tile_n
    num_tiles = pl.cdiv(n, tile)

    x2d = x_tokens.reshape(n, d_in)         # free reshape, no copy

    # VMEM budget: x blocks + out blocks (both lane-padded to 128) plus
    # in-kernel intermediates come to roughly 3.5 KB/row with double
    # buffering; give ~5 KB/row of headroom, min 32 MiB, capped below v5e/v6e
    # physical.  At the default tile this is ~40 MiB (fits v7x's 64 MiB).
    vmem_limit = int(min(100 * 2**20, max(32 * 2**20, 5 * 1024 * tile)))

    const = lambda a: pl.BlockSpec(a.shape, lambda i, _nd=a.ndim: (0,) * _nd)

    out2d = pl.pallas_call(
        _mlp_kernel,
        out_shape=jax.ShapeDtypeStruct((n, 2), jnp.float32),
        grid=(num_tiles,),
        in_specs=[
            pl.BlockSpec((tile, d_in), lambda i: (i, 0)),   # x row tile
            const(w1t), const(b1_row), const(w23t), const(b23_row),
        ],
        out_specs=pl.BlockSpec((tile, 2), lambda i: (i, 0)),  # row-major out
        compiler_params=pltpu.CompilerParams(
            dimension_semantics=("parallel",),
            vmem_limit_bytes=vmem_limit,
        ),
    )(x2d, w1t, b1_row, w23t, b23_row)

    return out2d.reshape(batch, seq, 2)


def init_params(key):
    """Deterministic params in torch nn.Linear layout: W is (out, in)."""
    k1, k2, k3, k4, k5, k6 = jax.random.split(key, 6)
    w1 = jax.random.normal(k1, (20, 10), jnp.float32) * 0.1
    b1 = jax.random.normal(k2, (20,), jnp.float32) * 0.1
    w2 = jax.random.normal(k3, (5, 20), jnp.float32) * 0.1
    b2 = jax.random.normal(k4, (5,), jnp.float32) * 0.1
    w3 = jax.random.normal(k5, (2, 5), jnp.float32) * 0.1
    b3 = jax.random.normal(k6, (2,), jnp.float32) * 0.1
    return (w1, b1, w2, b2, w3, b3)


def reference_forward(x_tokens, params):
    """Plain-JAX reference mirroring the PyTorch forward (unfused)."""
    w1, b1, w2, b2, w3, b3 = params
    h = jnp.maximum(x_tokens @ w1.T + b1, 0.0)
    h = h @ w2.T + b2
    return h @ w3.T + b3


if __name__ == "__main__":
    key = jax.random.PRNGKey(0)
    k_params, k_x = jax.random.split(key)

    params = init_params(k_params)

    # Small shapes consistent with forward(): batch=2, seq=4, feature dim=10.
    x_tokens = jax.random.normal(k_x, (2, 4, 10), jnp.float32)

    out = my_tiny_gpt_forward(x_tokens, params)
    out = jax.block_until_ready(out)

    ref = reference_forward(x_tokens, params)
    assert out.shape == (2, 4, 2)
    # Folding W3@W2 reassociates FP ops slightly; well within this tolerance.
    assert jnp.allclose(out, ref, atol=1e-5, rtol=1e-4), "mismatch vs reference"

    # NOTE: the module's nn.Embedding(100, 10) is never used in forward(), so
    # it is intentionally not instantiated here.
    print("KERNEL_OK")
</pallas_src>

<mosaic_0001>
module attributes {stable_mosaic.version = 11 : i64} {
  func.func @_mlp_kernel(%arg0: i32, %arg1: memref<8x10xf32, #tpu.memory_space<vmem>>, %arg2: memref<10x20xf32, #tpu.memory_space<vmem>>, %arg3: memref<1x20xf32, #tpu.memory_space<vmem>>, %arg4: memref<20x2xf32, #tpu.memory_space<vmem>>, %arg5: memref<1x2xf32, #tpu.memory_space<vmem>>, %arg6: memref<8x2xf32, #tpu.memory_space<vmem>>) attributes {dimension_semantics = [#tpu.dimension_semantics<parallel>], iteration_bounds = array<i64: 1>, scalar_prefetch = 0 : i64, scratch_operands = 0 : i64, tpu.core_type = #tpu.core_type<tc>, window_params = [{transform_indices = @transform_0, window_bounds = array<i64: 8, 10>}, {pipeline_mode = #tpu.pipeline_mode<synchronous>, transform_indices = @transform_1, window_bounds = array<i64: 10, 20>}, {pipeline_mode = #tpu.pipeline_mode<synchronous>, transform_indices = @transform_2, window_bounds = array<i64: 1, 20>}, {pipeline_mode = #tpu.pipeline_mode<synchronous>, transform_indices = @transform_3, window_bounds = array<i64: 20, 2>}, {pipeline_mode = #tpu.pipeline_mode<synchronous>, transform_indices = @transform_4, window_bounds = array<i64: 1, 2>}, {transform_indices = @transform_5, window_bounds = array<i64: 8, 2>}]} {
    %c0 = arith.constant 0 : index
    %c0_0 = arith.constant 0 : index
    %0 = vector.load %arg1[%c0, %c0_0] : memref<8x10xf32, #tpu.memory_space<vmem>>, vector<8x10xf32>
    %c0_1 = arith.constant 0 : index
    %c0_2 = arith.constant 0 : index
    %1 = vector.load %arg2[%c0_1, %c0_2] : memref<10x20xf32, #tpu.memory_space<vmem>>, vector<10x20xf32>
    %cst = arith.constant dense<0.000000e+00> : vector<8x20xf32>
    %2 = tpu.matmul %0, %1, %cst {dimension_numbers = #tpu.dot_dimension_numbers<[1], [0], [0], [1], [0, 0, 1, 1], [], []>} : vector<8x10xf32>, vector<10x20xf32>, vector<8x20xf32> -> vector<8x20xf32>
    %c0_3 = arith.constant 0 : index
    %c0_4 = arith.constant 0 : index
    %3 = vector.load %arg3[%c0_3, %c0_4] : memref<1x20xf32, #tpu.memory_space<vmem>>, vector<1x20xf32>
    %4 = vector.broadcast %3 : vector<1x20xf32> to vector<8x20xf32>
    %5 = arith.addf %2, %4 : vector<8x20xf32>
    %cst_5 = arith.constant 0.000000e+00 : f32
    %6 = vector.broadcast %cst_5 : f32 to vector<8x20xf32>
    %7 = arith.maximumf %5, %6 : vector<8x20xf32>
    %c0_6 = arith.constant 0 : index
    %c0_7 = arith.constant 0 : index
    %8 = vector.load %arg4[%c0_6, %c0_7] : memref<20x2xf32, #tpu.memory_space<vmem>>, vector<20x2xf32>
    %cst_8 = arith.constant dense<0.000000e+00> : vector<8x2xf32>
    %9 = tpu.matmul %7, %8, %cst_8 {dimension_numbers = #tpu.dot_dimension_numbers<[1], [0], [0], [1], [0, 0, 1, 1], [], []>} : vector<8x20xf32>, vector<20x2xf32>, vector<8x2xf32> -> vector<8x2xf32>
    %c0_9 = arith.constant 0 : index
    %c0_10 = arith.constant 0 : index
    %10 = vector.load %arg5[%c0_9, %c0_10] : memref<1x2xf32, #tpu.memory_space<vmem>>, vector<1x2xf32>
    %11 = vector.broadcast %10 : vector<1x2xf32> to vector<8x2xf32>
    %12 = arith.addf %9, %11 : vector<8x2xf32>
    %c0_11 = arith.constant 0 : index
    %c0_12 = arith.constant 0 : index
    %13 = vector.load %arg6[%c0_11, %c0_12] : memref<8x2xf32, #tpu.memory_space<vmem>>, vector<8x2xf32>
    tpu.vector_store %arg6[%c0_11, %c0_12], %12 {strides = array<i32>} : memref<8x2xf32, #tpu.memory_space<vmem>>, vector<8x2xf32>,
    return
  }
  func.func @transform_0(%arg0: i32) -> (i32, i32) {
    %c0_i32 = arith.constant 0 : i32
    %c0_i32_0 = arith.constant 0 : i32
    return %arg0, %c0_i32 : i32, i32
  }
  func.func @transform_1(%arg0: i32) -> (i32, i32) {
    %c0_i32 = arith.constant 0 : i32
    %c0_i32_0 = arith.constant 0 : i32
    %c0_i32_1 = arith.constant 0 : i32
    return %c0_i32, %c0_i32_0 : i32, i32
  }
  func.func @transform_2(%arg0: i32) -> (i32, i32) {
    %c0_i32 = arith.constant 0 : i32
    %c0_i32_0 = arith.constant 0 : i32
    %c0_i32_1 = arith.constant 0 : i32
    return %c0_i32, %c0_i32_0 : i32, i32
  }
  func.func @transform_3(%arg0: i32) -> (i32, i32) {
    %c0_i32 = arith.constant 0 : i32
    %c0_i32_0 = arith.constant 0 : i32
    %c0_i32_1 = arith.constant 0 : i32
    return %c0_i32, %c0_i32_0 : i32, i32
  }
  func.func @transform_4(%arg0: i32) -> (i32, i32) {
    %c0_i32 = arith.constant 0 : i32
    %c0_i32_0 = arith.constant 0 : i32
    %c0_i32_1 = arith.constant 0 : i32
    return %c0_i32, %c0_i32_0 : i32, i32
  }
  func.func @transform_5(%arg0: i32) -> (i32, i32) {
    %c0_i32 = arith.constant 0 : i32
    %c0_i32_0 = arith.constant 0 : i32
    return %arg0, %c0_i32 : i32, i32
  }
}

</mosaic_0001>

<llo_original>
// kernel: tpu_custom_call.1
$region0: #{tpu_custom_call.1}
  #allocation0 [shape = 'u32[]', space=smem, size = 0x4, offset = 0x4, fixed_abs, tag = 'smem constant byte address 0x4 - core index']
  #allocation1 [shape = 'u32[144,128]{1,0:T(1,128)}', space=vmem, size = 0x12000, scoped, tag = 'internal scratch']
  %s0 = inlined_call_operand.vmem [shape: f32[8,10], index: 0, kind: input, shape index: {}]
  %s1 = inlined_call_operand.vmem [shape: f32[10,20], index: 1, kind: input, shape index: {}]
  %s2 = inlined_call_operand.vmem [shape: f32[1,20], index: 2, kind: input, shape index: {}]
  %s3 = inlined_call_operand.vmem [shape: f32[20,2], index: 3, kind: input, shape index: {}]
  %s4 = inlined_call_operand.vmem [shape: f32[1,2], index: 4, kind: input, shape index: {}]
  %s5 = inlined_call_operand.vmem [shape: f32[8,2], index: 5, kind: output, shape index: {}]
  %s6 = sld [smem:[#allocation0]]
  $region30: #{tpu_custom_call.1} parent=0
    _
  %s8 = ssub.s32 1, %s6
  %s9 = scalar_select 0, %s8, %s6
  // Predicated region
  $region2: #{tpu_custom_call.1} parent=0 // pred_check
    _
  $region3: #{tpu_custom_call.1} parent=0 // pred_check_branch
    %11 = sbr.rel (0) target = $region5
  $region4: #{tpu_custom_call.1} parent=0 // pred_region
    _
  $region5: #{tpu_custom_call.1} parent=0 // pred_fallthru
    _
  // Predicated region
  $region6: #{tpu_custom_call.1} parent=0 // pred_check
    _
  $region7: #{tpu_custom_call.1} parent=0 // pred_check_branch
    %13 = sbr.rel (0) target = $region9
  $region8: #{tpu_custom_call.1} parent=0 // pred_region
    _
  $region9: #{tpu_custom_call.1} parent=0 // pred_fallthru
    _
  // Predicated region
  $region10: #{tpu_custom_call.1} parent=0 // pred_check
    _
  $region11: #{tpu_custom_call.1} parent=0 // pred_check_branch
    %15 = sbr.rel (0) target = $region13
  $region12: #{tpu_custom_call.1} parent=0 // pred_region
    _
  $region13: #{tpu_custom_call.1} parent=0 // pred_fallthru
    _
  // Predicated region
  $region14: #{tpu_custom_call.1} parent=0 // pred_check
    _
  $region15: #{tpu_custom_call.1} parent=0 // pred_check_branch
    %17 = sbr.rel (0) target = $region17
  $region16: #{tpu_custom_call.1} parent=0 // pred_region
    _
  $region17: #{tpu_custom_call.1} parent=0 // pred_fallthru
    _
  // Predicated region
  $region18: #{tpu_custom_call.1} parent=0 // pred_check
    _
  $region19: #{tpu_custom_call.1} parent=0 // pred_check_branch
    %19 = sbr.rel (0) target = $region21
  $region20: #{tpu_custom_call.1} parent=0 // pred_region
    _
  $region21: #{tpu_custom_call.1} parent=0 // pred_fallthru
    _
  %v20 = vld [vmem:[%s0] sm:$0xff]
  %v21 = vld [vmem:[%s1] sm:$0xff]
  %v22 = vld [vmem:[%s1 + $0x8] sm:$0x3]
  %v23 = vld [vmem:[%s2] sm:$0x1]
  %v25 = vlaneseq
  %v26 = vshrl.u32 %v25, 7
  %v27 = vsub.s32 0, %v26
  %v28 = vrot.slane %v23, %v27
  %vm30 = vcmask 80896
  %v32 = vsel %vm30, %v20, 0
  %vm34 = vcmask 1041408
  %v36 = vsel %vm34, %v22, 0
  %38 = vmatprep.subr.mxu0 0.0
  %39 = vmatpush1.msra.mxu0 %v21
  %40 = vmatprep.subr.mxu0 0.0
  %41 = vmatpush1.msra.mxu0 %v36
  %42 = vmatprep.subr.mxu0 0.0
  %43 = vmatpush1.msra.mxu0 0.0
  %44 = vmatprep.subr.mxu0 0.0
  %45 = vmatpush1.msra.mxu0 0.0
  %46 = vmatprep.subr.mxu0 0.0
  %47 = vmatpush1.msra.mxu0 0.0
  %48 = vmatprep.subr.mxu0 0.0
  %49 = vmatpush1.msra.mxu0 0.0
  %50 = vmatprep.subr.mxu0 0.0
  %51 = vmatpush1.msra.mxu0 0.0
  %52 = vmatprep.subr.mxu0 0.0
  %53 = vmatpush1.msra.mxu0 0.0
  %54 = vmatprep.subr.mxu0 0.0
  %55 = vmatpush1.msra.mxu0 0.0
  %56 = vmatprep.subr.mxu0 0.0
  %57 = vmatpush1.msra.mxu0 0.0
  %58 = vmatprep.subr.mxu0 0.0
  %59 = vmatpush1.msra.mxu0 0.0
  %60 = vmatprep.subr.mxu0 0.0
  %61 = vmatpush1.msra.mxu0 0.0
  %62 = vmatprep.subr.mxu0 0.0
  %63 = vmatpush1.msra.mxu0 0.0
  %64 = vmatprep.subr.mxu0 0.0
  %65 = vmatpush1.msra.mxu0 0.0
  %66 = vmatprep.subr.mxu0 0.0
  %67 = vmatpush1.msra.mxu0 0.0
  %68 = vmatprep.subr.mxu0 0.0
  %69 = vmatpush1.msra.mxu0 0.0
  %70 = vmatprep.subr.mxu0 0.0
  %71 = vmatpush1.msra.mxu0 0.0
  %72 = vmatprep.subr.mxu0 0.0
  %73 = vmatpush1.msra.mxu0 0.0
  %74 = vmatprep.subr.mxu0 0.0
  %75 = vmatpush1.msra.mxu0 0.0
  %76 = vmatprep.subr.mxu0 0.0
  %77 = vmatpush1.msra.mxu0 0.0
  %78 = vmatprep.subr.mxu0 0.0
  %79 = vmatpush1.msra.mxu0 0.0
  %80 = vmatprep.subr.mxu0 0.0
  %81 = vmatpush1.msra.mxu0 0.0
  %82 = vmatprep.subr.mxu0 0.0
  %83 = vmatpush1.msra.mxu0 0.0
  %84 = vmatprep.subr.mxu0 0.0
  %85 = vmatpush1.msra.mxu0 0.0
  %86 = vmatprep.subr.mxu0 0.0
  %87 = vmatpush1.msra.mxu0 0.0
  %88 = vmatprep.subr.mxu0 0.0
  %89 = vmatpush1.msra.mxu0 0.0
  %90 = vmatprep.subr.mxu0 0.0
  %91 = vmatpush1.msra.mxu0 0.0
  %92 = vmatprep.subr.mxu0 0.0
  %93 = vmatpush1.msra.mxu0 0.0
  %94 = vmatprep.subr.mxu0 0.0
  %95 = vmatpush1.msra.mxu0 0.0
  %96 = vmatprep.subr.mxu0 0.0
  %97 = vmatpush1.msra.mxu0 0.0
  %98 = vmatprep.subr.mxu0 0.0
  %99 = vmatpush1.msra.mxu0 0.0
  %100 = vmatprep.subr.mxu0 0.0
  %101 = vmatpush1.msra.mxu0 0.0
  %102 = vmatprep.mubr.f32.mxu0 0.0
  %103 = vmatmul.mubr.f32.gmra.mrb[0].mxu0 %v32
  %v104 = vpop.f32.mrb[0].mxu0
  %v105 = vadd.f32 %v28, %v104
  %v106 = vpop.f32.mrb[0].mxu0
  %107 = vdwg.mxu0
  %v108 = vmax.f32 %v105, 0.0
  %v109 = vld [vmem:[%s3] sm:$0xff]
  %v110 = vld [vmem:[%s3 + $0x8] sm:$0xff]
  %v111 = vld [vmem:[%s3 + $0x10] sm:$0xf]
  %v112 = vld [vmem:[%s4] sm:$0x1]
  %v114 = vlaneseq
  %v115 = vshrl.u32 %v114, 7
  %v116 = vsub.s32 0, %v115
  %v117 = vrot.slane %v112, %v116
  %vm119 = vcmask 162816
  %v121 = vsel %vm119, %v108, 0
  %vm123 = vcmask 1043456
  %v125 = vsel %vm123, %v111, 0
  %127 = vmatprep.subr.mxu0 0.0
  %128 = vmatpush1.msra.mxu0 %v109
  %129 = vmatprep.subr.mxu0 0.0
  %130 = vmatpush1.msra.mxu0 %v110
  %131 = vmatprep.subr.mxu0 0.0
  %132 = vmatpush1.msra.mxu0 %v125
  %133 = vmatprep.subr.mxu0 0.0
  %134 = vmatpush1.msra.mxu0 0.0
  %135 = vmatprep.subr.mxu0 0.0
  %136 = vmatpush1.msra.mxu0 0.0
  %137 = vmatprep.subr.mxu0 0.0
  %138 = vmatpush1.msra.mxu0 0.0
  %139 = vmatprep.subr.mxu0 0.0
  %140 = vmatpush1.msra.mxu0 0.0
  %141 = vmatprep.subr.mxu0 0.0
  %142 = vmatpush1.msra.mxu0 0.0
  %143 = vmatprep.subr.mxu0 0.0
  %144 = vmatpush1.msra.mxu0 0.0
  %145 = vmatprep.subr.mxu0 0.0
  %146 = vmatpush1.msra.mxu0 0.0
  %147 = vmatprep.subr.mxu0 0.0
  %148 = vmatpush1.msra.mxu0 0.0
  %149 = vmatprep.subr.mxu0 0.0
  %150 = vmatpush1.msra.mxu0 0.0
  %151 = vmatprep.subr.mxu0 0.0
  %152 = vmatpush1.msra.mxu0 0.0
  %153 = vmatprep.subr.mxu0 0.0
  %154 = vmatpush1.msra.mxu0 0.0
  %155 = vmatprep.subr.mxu0 0.0
  %156 = vmatpush1.msra.mxu0 0.0
  %157 = vmatprep.subr.mxu0 0.0
  %158 = vmatpush1.msra.mxu0 0.0
  %159 = vmatprep.subr.mxu0 0.0
  %160 = vmatpush1.msra.mxu0 0.0
  %161 = vmatprep.subr.mxu0 0.0
  %162 = vmatpush1.msra.mxu0 0.0
  %163 = vmatprep.subr.mxu0 0.0
  %164 = vmatpush1.msra.mxu0 0.0
  %165 = vmatprep.subr.mxu0 0.0
  %166 = vmatpush1.msra.mxu0 0.0
  %167 = vmatprep.subr.mxu0 0.0
  %168 = vmatpush1.msra.mxu0 0.0
  %169 = vmatprep.subr.mxu0 0.0
  %170 = vmatpush1.msra.mxu0 0.0
  %171 = vmatprep.subr.mxu0 0.0
  %172 = vmatpush1.msra.mxu0 0.0
  %173 = vmatprep.subr.mxu0 0.0
  %174 = vmatpush1.msra.mxu0 0.0
  %175 = vmatprep.subr.mxu0 0.0
  %176 = vmatpush1.msra.mxu0 0.0
  %177 = vmatprep.subr.mxu0 0.0
  %178 = vmatpush1.msra.mxu0 0.0
  %179 = vmatprep.subr.mxu0 0.0
  %180 = vmatpush1.msra.mxu0 0.0
  %181 = vmatprep.subr.mxu0 0.0
  %182 = vmatpush1.msra.mxu0 0.0
  %183 = vmatprep.subr.mxu0 0.0
  %184 = vmatpush1.msra.mxu0 0.0
  %185 = vmatprep.subr.mxu0 0.0
  %186 = vmatpush1.msra.mxu0 0.0
  %187 = vmatprep.subr.mxu0 0.0
  %188 = vmatpush1.msra.mxu0 0.0
  %189 = vmatprep.subr.mxu0 0.0
  %190 = vmatpush1.msra.mxu0 0.0
  %191 = vmatprep.mubr.f32.mxu0 0.0
  %192 = vmatmul.mubr.f32.gmra.mrb[0].mxu0 %v121
  %v193 = vpop.f32.mrb[0].mxu0
  %v194 = vadd.f32 %v117, %v193
  %v195 = vpop.f32.mrb[0].mxu0
  %196 = vdwg.mxu0
  %vm197 = vcmask 15360
  %198 = vst.msk [vmem:[%s5] sm:$0xff] %vm197, %v194
  // Predicated region
  $region22: #{tpu_custom_call.1} parent=0 // pred_check
    _
  $region23: #{tpu_custom_call.1} parent=0 // pred_check_branch
    %200 = sbr.rel (0) target = $region25
  $region24: #{tpu_custom_call.1} parent=0 // pred_region
    _
  $region25: #{tpu_custom_call.1} parent=0 // pred_fallthru
    _
  // Predicated region
  $region26: #{tpu_custom_call.1} parent=0 // pred_check
    _
  $region27: #{tpu_custom_call.1} parent=0 // pred_check_branch
    %202 = sbr.rel (0) target = $region29
  $region28: #{tpu_custom_call.1} parent=0 // pred_region
    _
  $region29: #{tpu_custom_call.1} parent=0 // pred_fallthru
    _

</llo_original>
